<compile_context>
chip_gen: v7x
topology: tpu7x:2x2x1
jax: 0.10.0
libtpu: 0.0.40
codegen_flags: <defaults>
</compile_context>

<pallas_src>
import jax
import jax.numpy as jnp
from jax.experimental import pallas as pl
from jax.experimental.pallas import tpu as pltpu


def _attentive_pooling_kernel(x_ref, madd_ref, w_ref, b_ref, o_ref):
    # x_ref:    (TB, L, D)  VMEM  input block
    # madd_ref: (TB, L)     VMEM  additive mask: 0.0 = keep, -inf = drop
    # w_ref:    (1, D)      VMEM  Linear(D -> 1) weight, lane-dense
    # b_ref:    (1, 1)      SMEM  Linear bias (scalar)
    # o_ref:    (TB, D)     VMEM  pooled output block
    x = x_ref[...].astype(jnp.float32)            # f32 math/accumulation (bf16-safe on v5e)
    w = w_ref[0].astype(jnp.float32)              # (D,)
    b = b_ref[0, 0]                               # scalar

    # Linear(D -> 1) per position: VPU multiply + cross-lane reduce over D.
    score = jnp.sum(x * w, axis=-1) + b           # (TB, L)  L on lanes
    # masked_fill(~mask, -inf) as an additive bias.
    score = score + madd_ref[...]                 # (TB, L)

    # Numerically-stable softmax over L, kept un-normalized.
    mx = jnp.max(score, axis=-1, keepdims=True)   # (TB, 1)
    e = jnp.exp(score - mx)                       # (TB, L)
    s = jnp.sum(e, axis=-1, keepdims=True)        # (TB, 1)

    # bmm(prob[TB,1,L], x[TB,L,D]) without normalizing prob first:
    # weighted sum over L on the VPU (sublane reduce), f32 accumulation.
    acc = jnp.sum(e[:, :, None] * x, axis=1)      # (TB, D)

    # Normalize once per row: EUP approximate reciprocal + one Newton step
    # (restores full f32 accuracy; D scales per row instead of L divides).
    inv = pl.reciprocal(s, approx=True)           # (TB, 1)
    inv = inv * (2.0 - s * inv)
    o_ref[...] = (acc * inv).astype(o_ref.dtype)  # lane-dense (TB, D) store


def _pick_block_b(B, L, D, target_bytes=4 * 1024 * 1024):
    """Largest batch block whose x tile is ~target_bytes, sublane-aligned."""
    row_bytes = 4 * L * D                 # one batch row of x in f32
    tb = max(1, target_bytes // row_bytes)
    if tb >= B:
        return B                          # whole batch fits in one block
    tb = (tb // 8) * 8                    # keep (TB, L)/(TB, D) blocks 8-sublane aligned
    return B if tb < 8 else tb


def attentive_pooling(x, mask, weight, bias, *, block_b=None):
    """x: (B, L, D) float; mask: (B, L) bool; weight: (D, 1); bias: ().  Returns (B, 1, D)."""
    B, L, D = x.shape
    tb = _pick_block_b(B, L, D) if block_b is None else block_b
    assert tb == B or tb % 8 == 0, "batch block must be a multiple of 8 (or the full batch)"
    grid = (pl.cdiv(B, tb),)

    # Lane-dense additive mask (0 keep / -inf drop), matching the (TB, L) score layout.
    madd = jnp.where(mask, 0.0, -jnp.inf).astype(jnp.float32)        # (B, L)
    w_row = weight.astype(jnp.float32).reshape(1, D)                 # (1, D)
    b_2d = jnp.reshape(bias.astype(jnp.float32), (1, 1))             # (1, 1)

    out = pl.pallas_call(
        _attentive_pooling_kernel,
        out_shape=jax.ShapeDtypeStruct((B, D), x.dtype),
        grid_spec=pltpu.PrefetchScalarGridSpec(
            num_scalar_prefetch=0,
            grid=grid,
            in_specs=[
                pl.BlockSpec((tb, L, D), lambda i: (i, 0, 0)),
                pl.BlockSpec((tb, L), lambda i: (i, 0)),
                pl.BlockSpec((1, D), lambda i: (0, 0)),
                pl.BlockSpec((1, 1), lambda i: (0, 0),
                             memory_space=pltpu.SMEM),
            ],
            out_specs=pl.BlockSpec((tb, D), lambda i: (i, 0)),
        ),
        compiler_params=pltpu.CompilerParams(
            dimension_semantics=("parallel",)),   # batch blocks shard across v7x's 2 TCs
    )(x, madd, w_row, b_2d)

    return out.reshape(B, 1, D)   # restore PyTorch's (bsz, 1, size)


def attentive_pooling_ref(x, mask, weight, bias):
    """Pure-JAX reference mirroring the PyTorch forward."""
    score = jnp.einsum("bld,do->bl", x, weight) + bias          # (B, L)
    score = jnp.where(mask, score, -jnp.inf)
    prob = jax.nn.softmax(score, axis=-1)                       # (B, L)
    return jnp.einsum("bl,bld->bd", prob, x)[:, None, :]        # (B, 1, D)


if __name__ == "__main__":
    # Small demo shapes; block_b=8 -> grid=(2,) exercises the batch-blocked path.
    B, L, D = 16, 16, 32

    key = jax.random.PRNGKey(0)
    kx, km, kw, kb = jax.random.split(key, 4)

    x = jax.random.normal(kx, (B, L, D), dtype=jnp.float32)

    # Random boolean mask; force position 0 valid so softmax is well-defined
    # (all-masked rows produce NaN, matching the PyTorch reference).
    mask = jax.random.bernoulli(km, p=0.7, shape=(B, L))
    mask = mask.at[:, 0].set(True)

    # Deterministic Linear(D, 1) parameters (synthetic init, Kaiming-ish scale).
    bound = 1.0 / (D ** 0.5)
    weight = jax.random.uniform(kw, (D, 1), minval=-bound, maxval=bound,
                                dtype=jnp.float32)
    bias = jax.random.uniform(kb, (), minval=-bound, maxval=bound,
                              dtype=jnp.float32)

    out = attentive_pooling(x, mask, weight, bias, block_b=8)
    out = jax.block_until_ready(out)

    ref = attentive_pooling_ref(x, mask, weight, bias)
    assert out.shape == (B, 1, D)
    assert jnp.allclose(out, ref, atol=1e-4, rtol=1e-4), "mismatch vs reference"

    print("KERNEL_OK")
</pallas_src>

<mosaic_0001>
module attributes {stable_mosaic.version = 11 : i64} {
  func.func @_attentive_pooling_kernel(%arg0: i32, %arg1: memref<8x16x32xf32, #tpu.memory_space<vmem>>, %arg2: memref<8x16xf32, #tpu.memory_space<vmem>>, %arg3: memref<1x32xf32, #tpu.memory_space<vmem>>, %arg4: memref<1x1xf32, #tpu.memory_space<smem>>, %arg5: memref<8x32xf32, #tpu.memory_space<vmem>>) attributes {dimension_semantics = [#tpu.dimension_semantics<parallel>], iteration_bounds = array<i64: 2>, scalar_prefetch = 0 : i64, scratch_operands = 0 : i64, tpu.core_type = #tpu.core_type<tc>, window_params = [{transform_indices = @transform_0, window_bounds = array<i64: 8, 16, 32>}, {transform_indices = @transform_1, window_bounds = array<i64: 8, 16>}, {pipeline_mode = #tpu.pipeline_mode<synchronous>, transform_indices = @transform_2, window_bounds = array<i64: 1, 32>}, {transform_indices = @transform_3, window_bounds = array<i64: 1, 1>}, {transform_indices = @transform_4, window_bounds = array<i64: 8, 32>}]} {
    %c0 = arith.constant 0 : index
    %c0_0 = arith.constant 0 : index
    %c0_1 = arith.constant 0 : index
    %0 = vector.load %arg1[%c0, %c0_0, %c0_1] : memref<8x16x32xf32, #tpu.memory_space<vmem>>, vector<8x16x32xf32>
    %c0_2 = arith.constant 0 : index
    %c0_3 = arith.constant 0 : index
    %1 = vector.load %arg3[%c0_2, %c0_3] : memref<1x32xf32, #tpu.memory_space<vmem>>, vector<1x32xf32>
    %2 = vector.shape_cast %1 : vector<1x32xf32> to vector<32xf32>
    %c0_4 = arith.constant 0 : index
    %c0_5 = arith.constant 0 : index
    %3 = memref.load %arg4[%c0_4, %c0_5] : memref<1x1xf32, #tpu.memory_space<smem>>
    %4 = vector.shape_cast %2 : vector<32xf32> to vector<1x1x32xf32>
    %5 = vector.broadcast %4 : vector<1x1x32xf32> to vector<8x16x32xf32>
    %6 = arith.mulf %0, %5 : vector<8x16x32xf32>
    %cst = arith.constant dense<0.000000e+00> : vector<8x16xf32>
    %7 = vector.multi_reduction <add>, %6, %cst [2] : vector<8x16x32xf32> to vector<8x16xf32>
    %8 = vector.broadcast %3 : f32 to vector<8x16xf32>
    %9 = arith.addf %7, %8 : vector<8x16xf32>
    %c0_6 = arith.constant 0 : index
    %c0_7 = arith.constant 0 : index
    %10 = vector.load %arg2[%c0_6, %c0_7] : memref<8x16xf32, #tpu.memory_space<vmem>>, vector<8x16xf32>
    %11 = arith.addf %9, %10 : vector<8x16xf32>
    %cst_8 = arith.constant dense<0xFF800000> : vector<8xf32>
    %12 = vector.multi_reduction <maximumf>, %11, %cst_8 [1] : vector<8x16xf32> to vector<8xf32>
    %13 = vector.shape_cast %12 : vector<8xf32> to vector<8x1xf32>
    %14 = vector.broadcast %13 : vector<8x1xf32> to vector<8x16xf32>
    %15 = arith.subf %11, %14 : vector<8x16xf32>
    %16 = math.exp %15 : vector<8x16xf32>
    %cst_9 = arith.constant dense<0.000000e+00> : vector<8xf32>
    %17 = vector.multi_reduction <add>, %16, %cst_9 [1] : vector<8x16xf32> to vector<8xf32>
    %18 = vector.shape_cast %17 : vector<8xf32> to vector<8x1xf32>
    %19 = vector.shape_cast %16 : vector<8x16xf32> to vector<8x16x1xf32>
    %20 = vector.broadcast %19 : vector<8x16x1xf32> to vector<8x16x32xf32>
    %21 = arith.mulf %20, %0 : vector<8x16x32xf32>
    %cst_10 = arith.constant dense<0.000000e+00> : vector<8x32xf32>
    %22 = vector.multi_reduction <add>, %21, %cst_10 [1] : vector<8x16x32xf32> to vector<8x32xf32>
    %23 = tpu.reciprocal %18 {approx = true} : vector<8x1xf32> -> vector<8x1xf32>
    %24 = arith.mulf %18, %23 : vector<8x1xf32>
    %cst_11 = arith.constant 2.000000e+00 : f32
    %25 = vector.broadcast %cst_11 : f32 to vector<8x1xf32>
    %26 = arith.subf %25, %24 : vector<8x1xf32>
    %27 = arith.mulf %23, %26 : vector<8x1xf32>
    %28 = vector.broadcast %27 : vector<8x1xf32> to vector<8x32xf32>
    %29 = arith.mulf %22, %28 : vector<8x32xf32>
    %c0_12 = arith.constant 0 : index
    %c0_13 = arith.constant 0 : index
    %30 = vector.load %arg5[%c0_12, %c0_13] : memref<8x32xf32, #tpu.memory_space<vmem>>, vector<8x32xf32>
    tpu.vector_store %arg5[%c0_12, %c0_13], %29 {strides = array<i32>} : memref<8x32xf32, #tpu.memory_space<vmem>>, vector<8x32xf32>,
    return
  }
  func.func @transform_0(%arg0: i32) -> (i32, i32, i32) {
    %c0_i32 = arith.constant 0 : i32
    %c0_i32_0 = arith.constant 0 : i32
    %c0_i32_1 = arith.constant 0 : i32
    return %arg0, %c0_i32, %c0_i32_0 : i32, i32, i32
  }
  func.func @transform_1(%arg0: i32) -> (i32, i32) {
    %c0_i32 = arith.constant 0 : i32
    %c0_i32_0 = arith.constant 0 : i32
    return %arg0, %c0_i32 : i32, i32
  }
  func.func @transform_2(%arg0: i32) -> (i32, i32) {
    %c0_i32 = arith.constant 0 : i32
    %c0_i32_0 = arith.constant 0 : i32
    %c0_i32_1 = arith.constant 0 : i32
    return %c0_i32, %c0_i32_0 : i32, i32
  }
  func.func @transform_3(%arg0: i32) -> (i32, i32) {
    %c0_i32 = arith.constant 0 : i32
    %c0_i32_0 = arith.constant 0 : i32
    %c0_i32_1 = arith.constant 0 : i32
    return %c0_i32, %c0_i32_0 : i32, i32
  }
  func.func @transform_4(%arg0: i32) -> (i32, i32) {
    %c0_i32 = arith.constant 0 : i32
    %c0_i32_0 = arith.constant 0 : i32
    return %arg0, %c0_i32 : i32, i32
  }
}

</mosaic_0001>

<llo_original>
// kernel: tpu_custom_call.1
$region0: #{tpu_custom_call.1}
  #allocation0 [shape = 'u32[]', space=smem, size = 0x4, offset = 0x4, fixed_abs, tag = 'smem constant byte address 0x4 - core index']
  #allocation1 [shape = 'u32[144,128]{1,0:T(1,128)}', space=vmem, size = 0x12000, scoped, tag = 'internal scratch']
  #allocation2 [shape = 'f32[1,1]{1,0:T(1,128)S(6)}', space=smem, size = 0x200, scoped, tag = 'scoped memory for tpu_custom_call.1']
  %s0 = inlined_call_operand.hbm [shape: f32[16,16,32], index: 0, kind: input, shape index: {}]
  %s1 = inlined_call_operand.hbm [shape: f32[16,16], index: 1, kind: input, shape index: {}]
  %s2 = inlined_call_operand.vmem [shape: f32[1,32], index: 2, kind: input, shape index: {}]
  %s3 = inlined_call_operand.<no memory space> [shape: f32[1,1], index: 3, kind: input, shape index: {}]
  %s4 = inlined_call_operand.hbm [shape: f32[16,32], index: 4, kind: output, shape index: {}]
  %s5 = sld [smem:[#allocation0]]
  $region57: #{tpu_custom_call.1} parent=0
    _
  %s7 = ssub.s32 1, %s5
  %s8 = scalar_select 0, %s7, %s5
  %9 = sst [smem:[#allocation2]] %s3
  $region1: #{tpu_custom_call.1} parent=0
    #allocation3 [shape = 'u8[131072]{0}', space=vmem, size = 0x20000, scoped, tag = 'input window, operand 0']
    #allocation4 [shape = 's32[2]{0}', space=sflag, size = 0x8, scoped, tag = 'scoped memory for tpu_custom_call.1']
    #allocation5 [shape = 's32[2]{0}', space=sflag, size = 0x8, scoped, tag = 'scoped memory for tpu_custom_call.1']
    #allocation6 [shape = 'u8[8192]{0}', space=vmem, size = 0x2000, scoped, tag = 'input window, operand 1']
    #allocation7 [shape = 's32[2]{0}', space=sflag, size = 0x8, scoped, tag = 'scoped memory for tpu_custom_call.1']
    #allocation8 [shape = 'u8[8192]{0}', space=vmem, size = 0x2000, scoped, tag = 'output window, operand 0']
    %10 = vsyncpa [#allocation4], 0
    %s11 = scalar_lea.sflag [#allocation4], 1
    %12 = vsyncpa %s11, 0
    %13 = vsyncpa [#allocation7], 0
    %s14 = scalar_lea.sflag [#allocation7], 1
    %15 = vsyncpa %s14, 0
    %16 = vsyncpa [#allocation5], 0
    %s17 = scalar_lea.sflag [#allocation5], 1
    %18 = vsyncpa %s17, 0
    loop: start=0, step=1, limit=4
    $region2: #{tpu_custom_call.1} parent=1 // loop_pre_header
      _
    $region3: #{tpu_custom_call.1} parent=1 // loop_header
      %s20 = sphi 0, %s24
      %p21 = scmp.ge.s32.totalorder %s20, 4
      %s30 = sphi 0, %s32
      %s33 = sphi 0, %s30
      %s34 = sphi 0, %s33
      %s50 = sphi 0, %s34
      %s56 = sphi 0, %s58
      %s59 = sphi 0, %s56
      %s60 = sphi 0, %s59
      %s76 = sphi 0, %s60
      %s80 = sphi 0, %s80
      %s82 = sphi 0, %s80
      %s83 = sphi 0, %s82
      %s97 = sphi 0, %s83
      %s101 = sphi 0, %s101
      %s103 = sphi 0, %s101
      %s104 = sphi 0, %s103
      %s118 = sphi 0, %s104
      %s124 = sphi 0, %s126
      %s127 = sphi 0, %s124
      %s128 = sphi 0, %s127
      %s144 = sphi 0, %s128
    $region4: #{tpu_custom_call.1} parent=1 // loop_header_branch
      %23 = sbr.rel (%p21) target = $region8
    $region5: #{tpu_custom_call.1} parent=1 // loop_body
      %s25 = ssub.s32 %s20, 1
      %s26 = ssub.s32 %s20, 2
      %s27 = sadd.s32 %s20, 1
      %s28 = ssub.s32 %s20, %s27
      %p29 = scmp.eq.s32.totalorder %s28, 0
      %s31 = sadd.s32 %s30, 1
      %s32 = scalar_select %p29, %s30, %s31
      %p35 = pneg %p29
      %p36 = scmp.eq.s32.totalorder %s20, 1
      %p37 = por %p35, %p36
      %p38 = scmp.ne.s32.totalorder %s30, %s33
      %p39 = scmp.eq.s32.totalorder %s20, 0
      %p40 = por %p38, %p39
      %p41 = scmp.ne.s32.totalorder %s30, %s33
      %p42 = scmp.eq.s32.totalorder %s25, 1
      %p43 = por %p41, %p42
      %p44 = scmp.ne.s32.totalorder %s33, %s34
      %p45 = scmp.eq.s32.totalorder %s25, 0
      %p46 = por %p44, %p45
      %p47 = scmp.ne.s32.totalorder %s33, %s34
      %p48 = scmp.eq.s32.totalorder %s26, 1
      %p49 = por %p47, %p48
      %p51 = scmp.ne.s32.totalorder %s34, %s50
      %p52 = scmp.eq.s32.totalorder %s26, 0
      %p53 = por %p51, %p52
      %s54 = ssub.s32 %s20, %s27
      %p55 = scmp.eq.s32.totalorder %s54, 0
      %s57 = sadd.s32 %s56, 1
      %s58 = scalar_select %p55, %s56, %s57
      %p61 = pneg %p55
      %p62 = scmp.eq.s32.totalorder %s20, 1
      %p63 = por %p61, %p62
      %p64 = scmp.ne.s32.totalorder %s56, %s59
      %p65 = scmp.eq.s32.totalorder %s20, 0
      %p66 = por %p64, %p65
      %p67 = scmp.ne.s32.totalorder %s56, %s59
      %p68 = scmp.eq.s32.totalorder %s25, 1
      %p69 = por %p67, %p68
      %p70 = scmp.ne.s32.totalorder %s59, %s60
      %p71 = scmp.eq.s32.totalorder %s25, 0
      %p72 = por %p70, %p71
      %p73 = scmp.ne.s32.totalorder %s59, %s60
      %p74 = scmp.eq.s32.totalorder %s26, 1
      %p75 = por %p73, %p74
      %p77 = scmp.ne.s32.totalorder %s60, %s76
      %p78 = scmp.eq.s32.totalorder %s26, 0
      %p79 = por %p77, %p78
      %s81 = sadd.s32 %s80, 1
      %p84 = scmp.eq.s32.totalorder %s20, 1
      %p85 = scmp.ne.s32.totalorder %s80, %s82
      %p86 = scmp.eq.s32.totalorder %s20, 0
      %p87 = por %p85, %p86
      %p88 = scmp.ne.s32.totalorder %s80, %s82
      %p89 = scmp.eq.s32.totalorder %s25, 1
      %p90 = por %p88, %p89
      %p91 = scmp.ne.s32.totalorder %s82, %s83
      %p92 = scmp.eq.s32.totalorder %s25, 0
      %p93 = por %p91, %p92
      %p94 = scmp.ne.s32.totalorder %s82, %s83
      %p95 = scmp.eq.s32.totalorder %s26, 1
      %p96 = por %p94, %p95
      %p98 = scmp.ne.s32.totalorder %s83, %s97
      %p99 = scmp.eq.s32.totalorder %s26, 0
      %p100 = por %p98, %p99
      %s102 = sadd.s32 %s101, 1
      %p105 = scmp.eq.s32.totalorder %s20, 1
      %p106 = scmp.ne.s32.totalorder %s101, %s103
      %p107 = scmp.eq.s32.totalorder %s20, 0
      %p108 = por %p106, %p107
      %p109 = scmp.ne.s32.totalorder %s101, %s103
      %p110 = scmp.eq.s32.totalorder %s25, 1
      %p111 = por %p109, %p110
      %p112 = scmp.ne.s32.totalorder %s103, %s104
      %p113 = scmp.eq.s32.totalorder %s25, 0
      %p114 = por %p112, %p113
      %p115 = scmp.ne.s32.totalorder %s103, %s104
      %p116 = scmp.eq.s32.totalorder %s26, 1
      %p117 = por %p115, %p116
      %p119 = scmp.ne.s32.totalorder %s104, %s118
      %p120 = scmp.eq.s32.totalorder %s26, 0
      %p121 = por %p119, %p120
      %s122 = ssub.s32 %s20, %s27
      %p123 = scmp.eq.s32.totalorder %s122, 0
      %s125 = sadd.s32 %s124, 1
      %s126 = scalar_select %p123, %s124, %s125
      %p129 = pneg %p123
      %p130 = scmp.eq.s32.totalorder %s20, 1
      %p131 = por %p129, %p130
      %p132 = scmp.ne.s32.totalorder %s124, %s127
      %p133 = scmp.eq.s32.totalorder %s20, 0
      %p134 = por %p132, %p133
      %p135 = scmp.ne.s32.totalorder %s124, %s127
      %p136 = scmp.eq.s32.totalorder %s25, 1
      %p137 = por %p135, %p136
      %p138 = scmp.ne.s32.totalorder %s127, %s128
      %p139 = scmp.eq.s32.totalorder %s25, 0
      %p140 = por %p138, %p139
      %p141 = scmp.ne.s32.totalorder %s127, %s128
      %p142 = scmp.eq.s32.totalorder %s26, 1
      %p143 = por %p141, %p142
      %p145 = scmp.ne.s32.totalorder %s128, %s144
      %p146 = scmp.eq.s32.totalorder %s26, 0
      %p147 = por %p145, %p146
      %p148 = scmp.le.s32.totalorder 1, %s20
      %p149 = scmp.lt.s32.totalorder %s20, 3
      %p150 = pnand %p148, %p149
      %p151 = pneg %p150
      // Predicated region
      $region9: #{tpu_custom_call.1} parent=5 // pred_check
        _
      $region10: #{tpu_custom_call.1} parent=5 // pred_check_branch
        %153 = sbr.rel (%p150) target = $region12
      $region11: #{tpu_custom_call.1} parent=5 // pred_region
        %s154 = ssub.s32 %s20, 1
        // Predicated region
        $region13: #{tpu_custom_call.1} parent=11 // pred_check
          %p155 = pneg %p93
        $region14: #{tpu_custom_call.1} parent=11 // pred_check_branch
          %157 = sbr.rel (%p155) target = $region16
        $region15: #{tpu_custom_call.1} parent=11 // pred_region
          _
        $region16: #{tpu_custom_call.1} parent=11 // pred_fallthru
          _
        // Predicated region
        $region17: #{tpu_custom_call.1} parent=11 // pred_check
          %p158 = pneg %p114
        $region18: #{tpu_custom_call.1} parent=11 // pred_check_branch
          %160 = sbr.rel (%p158) target = $region20
        $region19: #{tpu_custom_call.1} parent=11 // pred_region
          _
        $region20: #{tpu_custom_call.1} parent=11 // pred_fallthru
          _
      $region12: #{tpu_custom_call.1} parent=5 // pred_fallthru
        _
      %p161 = scmp.lt.s32.totalorder %s20, 2
      // Predicated region
      $region21: #{tpu_custom_call.1} parent=5 // pred_check
        %p162 = pneg %p161
      $region22: #{tpu_custom_call.1} parent=5 // pred_check_branch
        %164 = sbr.rel (%p162) target = $region24
      $region23: #{tpu_custom_call.1} parent=5 // pred_region
        // Predicated region
        $region25: #{tpu_custom_call.1} parent=23 // pred_check
          %p165 = pneg %p40
        $region26: #{tpu_custom_call.1} parent=23 // pred_check_branch
          %167 = sbr.rel (%p165) target = $region28
        $region27: #{tpu_custom_call.1} parent=23 // pred_region
          %s168 = sand.u32 %s30, 1
          %s169 = scalar_lea.sflag [#allocation4], %s168
          %s170 = sand.u32 %s30, 1
          %s171 = smul.addr %s170, 128
          %s172 = scalar_lea.vmem [#allocation3], %s171
          %s173 = smul.u32 8, %s20
          %s175 = ssub.s32 2048, 2048
          %176 = vsyncadd %s169, %s175
          %s177 = smul.addr %s173, 2
          %s178 = smul.addr %s177, 128
          %s179 = scalar_lea.hbm %s0, %s178
          %s180 = sshll.u32 %s172, 4
          %s181 = int_to_ptr.vmem [resolvable:$true] %s180
          %186 = dma.hbm_to_vmem [thread:$0]  %s179, 2048, %s181, %s169, 128, 128, 8
        $region28: #{tpu_custom_call.1} parent=23 // pred_fallthru
          _
        // Predicated region
        $region29: #{tpu_custom_call.1} parent=23 // pred_check
          %p187 = pneg %p66
        $region30: #{tpu_custom_call.1} parent=23 // pred_check_branch
          %189 = sbr.rel (%p187) target = $region32
        $region31: #{tpu_custom_call.1} parent=23 // pred_region
          %s190 = sand.u32 %s56, 1
          %s191 = scalar_lea.sflag [#allocation7], %s190
          %s192 = sand.u32 %s56, 1
          %s193 = smul.addr %s192, 8
          %s194 = scalar_lea.vmem [#allocation6], %s193
          %s196 = ssub.s32 128, 128
          %197 = vsyncadd %s191, %s196
          %s198 = smul.addr %s20, 128
          %s199 = scalar_lea.hbm %s1, %s198
          %s201 = sshll.u32 %s194, 4
          %s202 = int_to_ptr.vmem [resolvable:$true] %s201
          %204 = dma.hbm_to_vmem [thread:$0]  %s199, 128, %s202, %s191
        $region32: #{tpu_custom_call.1} parent=23 // pred_fallthru
          _
      $region24: #{tpu_custom_call.1} parent=5 // pred_fallthru
        _
      %p205 = scmp.le.s32.totalorder 1, %s20
      %p206 = scmp.lt.s32.totalorder %s20, 3
      %p207 = pnand %p205, %p206
      %p208 = pneg %p207
      // Predicated region
      $region33: #{tpu_custom_call.1} parent=5 // pred_check
        _
      $region34: #{tpu_custom_call.1} parent=5 // pred_check_branch
        %210 = sbr.rel (%p207) target = $region36
      $region35: #{tpu_custom_call.1} parent=5 // pred_region
        %s211 = ssub.s32 %s20, 1
        %s212 = sand.u32 %s33, 1
        %s213 = scalar_lea.sflag [#allocation4], %s212
        %s214 = sand.u32 %s33, 1
        %s215 = smul.addr %s214, 128
        %s216 = scalar_lea.vmem [#allocation3], %s215
        // Predicated region
        $region37: #{tpu_custom_call.1} parent=35 // pred_check
          %p217 = pneg %p46
        $region38: #{tpu_custom_call.1} parent=35 // pred_check_branch
          %219 = sbr.rel (%p217) target = $region40
        $region39: #{tpu_custom_call.1} parent=35 // pred_region
          %220 = dma.done %s213, 2048
        $region40: #{tpu_custom_call.1} parent=35 // pred_fallthru
          _
        %s221 = sand.u32 %s59, 1
        %s222 = scalar_lea.sflag [#allocation7], %s221
        %s223 = sand.u32 %s59, 1
        %s224 = smul.addr %s223, 8
        %s225 = scalar_lea.vmem [#allocation6], %s224
        // Predicated region
        $region41: #{tpu_custom_call.1} parent=35 // pred_check
          %p226 = pneg %p72
        $region42: #{tpu_custom_call.1} parent=35 // pred_check_branch
          %228 = sbr.rel (%p226) target = $region44
        $region43: #{tpu_custom_call.1} parent=35 // pred_region
          %229 = dma.done %s222, 128
        $region44: #{tpu_custom_call.1} parent=35 // pred_fallthru
          _
        %s230 = sand.u32 %s33, 1
        %s231 = scalar_lea.sflag [#allocation4], %s230
        %s232 = sand.u32 %s33, 1
        %s233 = smul.addr %s232, 128
        %s234 = scalar_lea.vmem [#allocation3], %s233
        %p235 = pneg %p46
        %p236 = pneg %p43
        %s237 = sand.u32 %s59, 1
        %s238 = scalar_lea.sflag [#allocation7], %s237
        %s239 = sand.u32 %s59, 1
        %s240 = smul.addr %s239, 8
        %s241 = scalar_lea.vmem [#allocation6], %s240
        %p242 = pneg %p72
        %p243 = pneg %p69
        %p244 = pneg %p93
        %p245 = pneg %p90
        %p246 = pneg %p114
        %p247 = pneg %p111
        %p248 = pneg %p140
        %p249 = pneg %p137
        %s250 = sand.u32 %s127, 1
        %s251 = scalar_lea.sflag [#allocation5], %s250
        %s252 = sand.u32 %s127, 1
        %s253 = smul.addr %s252, 8
        %s254 = scalar_lea.vmem [#allocation8], %s253
        %s255 = smul.u32 8, %s25
        %v256 = vld [vmem:[%s216] sm:$0xff]
        %v257 = vld [vmem:[%s216 + $0x8] sm:$0xff]
        %v258 = vld [vmem:[%s216 + $0x10] sm:$0xff]
        %v259 = vld [vmem:[%s216 + $0x18] sm:$0xff]
        %v260 = vld [vmem:[%s216 + $0x20] sm:$0xff]
        %v261 = vld [vmem:[%s216 + $0x28] sm:$0xff]
        %v262 = vld [vmem:[%s216 + $0x30] sm:$0xff]
        %v263 = vld [vmem:[%s216 + $0x38] sm:$0xff]
        %v264 = vld [vmem:[%s216 + $0x40] sm:$0xff]
        %v265 = vld [vmem:[%s216 + $0x48] sm:$0xff]
        %v266 = vld [vmem:[%s216 + $0x50] sm:$0xff]
        %v267 = vld [vmem:[%s216 + $0x58] sm:$0xff]
        %v268 = vld [vmem:[%s216 + $0x60] sm:$0xff]
        %v269 = vld [vmem:[%s216 + $0x68] sm:$0xff]
        %v270 = vld [vmem:[%s216 + $0x70] sm:$0xff]
        %v271 = vld [vmem:[%s216 + $0x78] sm:$0xff]
        %v272 = vld [vmem:[%s2] sm:$0x1]
        %s273 = sld [smem:[#allocation2]]
        %v275 = vlaneseq
        %v276 = vshrl.u32 %v275, 7
        %v277 = vsub.s32 0, %v276
        %v278 = vrot.slane %v272, %v277
        %v280 = vmul.f32 %v256, %v278
        %v281 = vmul.f32 %v257, %v278
        %v282 = vmul.f32 %v258, %v278
        %v283 = vmul.f32 %v259, %v278
        %v284 = vmul.f32 %v260, %v278
        %v285 = vmul.f32 %v261, %v278
        %v286 = vmul.f32 %v262, %v278
        %v287 = vmul.f32 %v263, %v278
        %v288 = vmul.f32 %v264, %v278
        %v289 = vmul.f32 %v265, %v278
        %v290 = vmul.f32 %v266, %v278
        %v291 = vmul.f32 %v267, %v278
        %v292 = vmul.f32 %v268, %v278
        %v293 = vmul.f32 %v269, %v278
        %v294 = vmul.f32 %v270, %v278
        %v295 = vmul.f32 %v271, %v278
        %vm296 = vcmask 261120
        %v297 = vsel %vm296, %v280, 0.0
        %298 = vadd.xlane.f32.xlu0 %v297
        %v299 = vpop.xlane.xlu0 %298
        %v300 = vsel %vm296, %v281, 0.0
        %301 = vadd.xlane.f32.xlu0 %v300
        %v302 = vpop.xlane.xlu0 %301
        %v303 = vsel %vm296, %v282, 0.0
        %304 = vadd.xlane.f32.xlu0 %v303
        %v305 = vpop.xlane.xlu0 %304
        %v306 = vsel %vm296, %v283, 0.0
        %307 = vadd.xlane.f32.xlu0 %v306
        %v308 = vpop.xlane.xlu0 %307
        %v309 = vsel %vm296, %v284, 0.0
        %310 = vadd.xlane.f32.xlu0 %v309
        %v311 = vpop.xlane.xlu0 %310
        %v312 = vsel %vm296, %v285, 0.0
        %313 = vadd.xlane.f32.xlu0 %v312
        %v314 = vpop.xlane.xlu0 %313
        %v315 = vsel %vm296, %v286, 0.0
        %316 = vadd.xlane.f32.xlu0 %v315
        %v317 = vpop.xlane.xlu0 %316
        %v318 = vsel %vm296, %v287, 0.0
        %319 = vadd.xlane.f32.xlu0 %v318
        %v320 = vpop.xlane.xlu0 %319
        %v321 = vsel %vm296, %v288, 0.0
        %322 = vadd.xlane.f32.xlu0 %v321
        %v323 = vpop.xlane.xlu0 %322
        %v324 = vsel %vm296, %v289, 0.0
        %325 = vadd.xlane.f32.xlu0 %v324
        %v326 = vpop.xlane.xlu0 %325
        %v327 = vsel %vm296, %v290, 0.0
        %328 = vadd.xlane.f32.xlu0 %v327
        %v329 = vpop.xlane.xlu0 %328
        %v330 = vsel %vm296, %v291, 0.0
        %331 = vadd.xlane.f32.xlu0 %v330
        %v332 = vpop.xlane.xlu0 %331
        %v333 = vsel %vm296, %v292, 0.0
        %334 = vadd.xlane.f32.xlu0 %v333
        %v335 = vpop.xlane.xlu0 %334
        %v336 = vsel %vm296, %v293, 0.0
        %337 = vadd.xlane.f32.xlu0 %v336
        %v338 = vpop.xlane.xlu0 %337
        %v339 = vsel %vm296, %v294, 0.0
        %340 = vadd.xlane.f32.xlu0 %v339
        %v341 = vpop.xlane.xlu0 %340
        %v342 = vsel %vm296, %v295, 0.0
        %343 = vadd.xlane.f32.xlu0 %v342
        %v344 = vpop.xlane.xlu0 %343
        %v345 = vstv %s273
        %v346 = vadd.f32 %v299, %v345
        %v347 = vadd.f32 %v302, %v345
        %v348 = vadd.f32 %v305, %v345
        %v349 = vadd.f32 %v308, %v345
        %v350 = vadd.f32 %v311, %v345
        %v351 = vadd.f32 %v314, %v345
        %v352 = vadd.f32 %v317, %v345
        %v353 = vadd.f32 %v320, %v345
        %v354 = vadd.f32 %v323, %v345
        %v355 = vadd.f32 %v326, %v345
        %v356 = vadd.f32 %v329, %v345
        %v357 = vadd.f32 %v332, %v345
        %v358 = vadd.f32 %v335, %v345
        %v359 = vadd.f32 %v338, %v345
        %v360 = vadd.f32 %v341, %v345
        %v361 = vadd.f32 %v344, %v345
        %v362 = vld [vmem:[%s225] sm:$0xff]
        %v364 = vlaneseq
        %v365 = vshrl.u32 %v364, 7
        %v366 = vsub.s32 0, %v365
        %v367 = vrot.slane %v362, %v366
        %369 = vbcast.lane.b32.xlu0 %v367, 256
        %v370 = vpop.permute.xlu0 %369
        %s372 = sor.u32 256, 8
        %373 = vbcast.lane.b32.xlu0 %v367, %s372
        %v374 = vpop.permute.xlu0 %373
        %v375 = vlaneseq
        %v376 = vshrl.u32 %v375, 7
        %v377 = vsub.s32 1, %v376
        %v378 = vrot.slane %v362, %v377
        %380 = vbcast.lane.b32.xlu0 %v378, 256
        %v381 = vpop.permute.xlu0 %380
        %s383 = sor.u32 256, 8
        %384 = vbcast.lane.b32.xlu0 %v378, %s383
        %v385 = vpop.permute.xlu0 %384
        %v386 = vlaneseq
        %v387 = vshrl.u32 %v386, 7
        %v388 = vsub.s32 2, %v387
        %v389 = vrot.slane %v362, %v388
        %391 = vbcast.lane.b32.xlu0 %v389, 256
        %v392 = vpop.permute.xlu0 %391
        %s394 = sor.u32 256, 8
        %395 = vbcast.lane.b32.xlu0 %v389, %s394
        %v396 = vpop.permute.xlu0 %395
        %v397 = vlaneseq
        %v398 = vshrl.u32 %v397, 7
        %v399 = vsub.s32 3, %v398
        %v400 = vrot.slane %v362, %v399
        %402 = vbcast.lane.b32.xlu0 %v400, 256
        %v403 = vpop.permute.xlu0 %402
        %s405 = sor.u32 256, 8
        %406 = vbcast.lane.b32.xlu0 %v400, %s405
        %v407 = vpop.permute.xlu0 %406
        %v408 = vlaneseq
        %v409 = vshrl.u32 %v408, 7
        %v410 = vsub.s32 4, %v409
        %v411 = vrot.slane %v362, %v410
        %413 = vbcast.lane.b32.xlu0 %v411, 256
        %v414 = vpop.permute.xlu0 %413
        %s416 = sor.u32 256, 8
        %417 = vbcast.lane.b32.xlu0 %v411, %s416
        %v418 = vpop.permute.xlu0 %417
        %v419 = vlaneseq
        %v420 = vshrl.u32 %v419, 7
        %v421 = vsub.s32 5, %v420
        %v422 = vrot.slane %v362, %v421
        %424 = vbcast.lane.b32.xlu0 %v422, 256
        %v425 = vpop.permute.xlu0 %424
        %s427 = sor.u32 256, 8
        %428 = vbcast.lane.b32.xlu0 %v422, %s427
        %v429 = vpop.permute.xlu0 %428
        %v430 = vlaneseq
        %v431 = vshrl.u32 %v430, 7
        %v432 = vsub.s32 6, %v431
        %v433 = vrot.slane %v362, %v432
        %435 = vbcast.lane.b32.xlu0 %v433, 256
        %v436 = vpop.permute.xlu0 %435
        %s438 = sor.u32 256, 8
        %439 = vbcast.lane.b32.xlu0 %v433, %s438
        %v440 = vpop.permute.xlu0 %439
        %v441 = vlaneseq
        %v442 = vshrl.u32 %v441, 7
        %v443 = vsub.s32 7, %v442
        %v444 = vrot.slane %v362, %v443
        %446 = vbcast.lane.b32.xlu0 %v444, 256
        %v447 = vpop.permute.xlu0 %446
        %s449 = sor.u32 256, 8
        %450 = vbcast.lane.b32.xlu0 %v444, %s449
        %v451 = vpop.permute.xlu0 %450
        %v468 = vadd.f32 %v346, %v370
        %v469 = vadd.f32 %v347, %v374
        %v470 = vadd.f32 %v348, %v381
        %v471 = vadd.f32 %v349, %v385
        %v472 = vadd.f32 %v350, %v392
        %v473 = vadd.f32 %v351, %v396
        %v474 = vadd.f32 %v352, %v403
        %v475 = vadd.f32 %v353, %v407
        %v476 = vadd.f32 %v354, %v414
        %v477 = vadd.f32 %v355, %v418
        %v478 = vadd.f32 %v356, %v425
        %v479 = vadd.f32 %v357, %v429
        %v480 = vadd.f32 %v358, %v436
        %v481 = vadd.f32 %v359, %v440
        %v482 = vadd.f32 %v360, %v447
        %v483 = vadd.f32 %v361, %v451
        %500 = vset.pattern.permute.xlu0 0
        %501 = vperm.xlu0 %500, %v468
        %v502 = vpop.permute.xlu0 %501
        %503 = vset.pattern.permute.xlu0 0
        %504 = vperm.xlu0 %503, %v469
        %v505 = vpop.permute.xlu0 %504
        %506 = vset.pattern.permute.xlu0 0
        %507 = vperm.xlu0 %506, %v470
        %v508 = vpop.permute.xlu0 %507
        %509 = vset.pattern.permute.xlu0 0
        %510 = vperm.xlu0 %509, %v471
        %v511 = vpop.permute.xlu0 %510
        %512 = vset.pattern.permute.xlu0 0
        %513 = vperm.xlu0 %512, %v472
        %v514 = vpop.permute.xlu0 %513
        %515 = vset.pattern.permute.xlu0 0
        %516 = vperm.xlu0 %515, %v473
        %v517 = vpop.permute.xlu0 %516
        %518 = vset.pattern.permute.xlu0 0
        %519 = vperm.xlu0 %518, %v474
        %v520 = vpop.permute.xlu0 %519
        %521 = vset.pattern.permute.xlu0 0
        %522 = vperm.xlu0 %521, %v475
        %v523 = vpop.permute.xlu0 %522
        %524 = vset.pattern.permute.xlu0 0
        %525 = vperm.xlu0 %524, %v476
        %v526 = vpop.permute.xlu0 %525
        %527 = vset.pattern.permute.xlu0 0
        %528 = vperm.xlu0 %527, %v477
        %v529 = vpop.permute.xlu0 %528
        %530 = vset.pattern.permute.xlu0 0
        %531 = vperm.xlu0 %530, %v478
        %v532 = vpop.permute.xlu0 %531
        %533 = vset.pattern.permute.xlu0 0
        %534 = vperm.xlu0 %533, %v479
        %v535 = vpop.permute.xlu0 %534
        %536 = vset.pattern.permute.xlu0 0
        %537 = vperm.xlu0 %536, %v480
        %v538 = vpop.permute.xlu0 %537
        %539 = vset.pattern.permute.xlu0 0
        %540 = vperm.xlu0 %539, %v481
        %v541 = vpop.permute.xlu0 %540
        %542 = vset.pattern.permute.xlu0 0
        %543 = vperm.xlu0 %542, %v482
        %v544 = vpop.permute.xlu0 %543
        %545 = vset.pattern.permute.xlu0 0
        %546 = vperm.xlu0 %545, %v483
        %v547 = vpop.permute.xlu0 %546
        %v548 = vlaneseq
        %v549 = vand.u32 %v548, 127
        %v550 = vlaneseq
        %v551 = vshrl.u32 %v550, 7
        %v552 = vsub.s32 %v549, %v551
        %v553 = vrot.slane %v502, %v552
        %v554 = vadd.s32 %v549, 4294967288
        %v555 = vlaneseq
        %v556 = vshrl.u32 %v555, 7
        %v557 = vsub.s32 %v554, %v556
        %v558 = vrot.slane %v505, %v557
        %vm559 = vcmask 130112
        %v560 = vsel %vm559, %v558, %v553
        %v561 = vlaneseq
        %v562 = vshrl.u32 %v561, 7
        %v563 = vsub.s32 %v549, %v562
        %v564 = vrot.slane %v508, %v563
        %v565 = vlaneseq
        %v566 = vshrl.u32 %v565, 7
        %v567 = vsub.s32 %v554, %v566
        %v568 = vrot.slane %v511, %v567
        %v569 = vsel %vm559, %v568, %v564
        %v570 = vlaneseq
        %v571 = vshrl.u32 %v570, 7
        %v572 = vsub.s32 %v549, %v571
        %v573 = vrot.slane %v514, %v572
        %v574 = vlaneseq
        %v575 = vshrl.u32 %v574, 7
        %v576 = vsub.s32 %v554, %v575
        %v577 = vrot.slane %v517, %v576
        %v578 = vsel %vm559, %v577, %v573
        %v579 = vlaneseq
        %v580 = vshrl.u32 %v579, 7
        %v581 = vsub.s32 %v549, %v580
        %v582 = vrot.slane %v520, %v581
        %v583 = vlaneseq
        %v584 = vshrl.u32 %v583, 7
        %v585 = vsub.s32 %v554, %v584
        %v586 = vrot.slane %v523, %v585
        %v587 = vsel %vm559, %v586, %v582
        %v588 = vlaneseq
        %v589 = vshrl.u32 %v588, 7
        %v590 = vsub.s32 %v549, %v589
        %v591 = vrot.slane %v526, %v590
        %v592 = vlaneseq
        %v593 = vshrl.u32 %v592, 7
        %v594 = vsub.s32 %v554, %v593
        %v595 = vrot.slane %v529, %v594
        %v596 = vsel %vm559, %v595, %v591
        %v597 = vlaneseq
        %v598 = vshrl.u32 %v597, 7
        %v599 = vsub.s32 %v549, %v598
        %v600 = vrot.slane %v532, %v599
        %v601 = vlaneseq
        %v602 = vshrl.u32 %v601, 7
        %v603 = vsub.s32 %v554, %v602
        %v604 = vrot.slane %v535, %v603
        %v605 = vsel %vm559, %v604, %v600
        %v606 = vlaneseq
        %v607 = vshrl.u32 %v606, 7
        %v608 = vsub.s32 %v549, %v607
        %v609 = vrot.slane %v538, %v608
        %v610 = vlaneseq
        %v611 = vshrl.u32 %v610, 7
        %v612 = vsub.s32 %v554, %v611
        %v613 = vrot.slane %v541, %v612
        %v614 = vsel %vm559, %v613, %v609
        %v615 = vlaneseq
        %v616 = vshrl.u32 %v615, 7
        %v617 = vsub.s32 %v549, %v616
        %v618 = vrot.slane %v544, %v617
        %v619 = vlaneseq
        %v620 = vshrl.u32 %v619, 7
        %v621 = vsub.s32 %v554, %v620
        %v622 = vrot.slane %v547, %v621
        %v623 = vsel %vm559, %v622, %v618
        %vm624 = vcmask 1041409
        %v625 = vsel %vm624, %v569, %v560
        %vm626 = vcmask 1042434
        %v627 = vsel %vm626, %v578, %v625
        %vm628 = vcmask 1043459
        %v629 = vsel %vm628, %v587, %v627
        %vm630 = vcmask 1044484
        %v631 = vsel %vm630, %v596, %v629
        %vm632 = vcmask 1045509
        %v633 = vsel %vm632, %v605, %v631
        %vm634 = vcmask 1046534
        %v635 = vsel %vm634, %v614, %v633
        %vm636 = vcmask 1047559
        %v637 = vsel %vm636, %v623, %v635
        %vm639 = vcmask 130048
        %v640 = vsel %vm639, %v637, -inf
        %641 = vmax.xlane.f32.xlu0 %v640
        %v642 = vpop.xlane.xlu0 %641
        %v644 = vlaneseq
        %v645 = vshrl.u32 %v644, 7
        %v646 = vsub.s32 0, %v645
        %v647 = vrot.slane %v642, %v646
        %v648 = vlaneseq
        %v649 = vshrl.u32 %v648, 7
        %v650 = vsub.s32 1, %v649
        %v651 = vrot.slane %v642, %v650
        %v652 = vlaneseq
        %v653 = vshrl.u32 %v652, 7
        %v654 = vsub.s32 2, %v653
        %v655 = vrot.slane %v642, %v654
        %v656 = vlaneseq
        %v657 = vshrl.u32 %v656, 7
        %v658 = vsub.s32 3, %v657
        %v659 = vrot.slane %v642, %v658
        %v660 = vlaneseq
        %v661 = vshrl.u32 %v660, 7
        %v662 = vsub.s32 4, %v661
        %v663 = vrot.slane %v642, %v662
        %v664 = vlaneseq
        %v665 = vshrl.u32 %v664, 7
        %v666 = vsub.s32 5, %v665
        %v667 = vrot.slane %v642, %v666
        %v668 = vlaneseq
        %v669 = vshrl.u32 %v668, 7
        %v670 = vsub.s32 6, %v669
        %v671 = vrot.slane %v642, %v670
        %v672 = vlaneseq
        %v673 = vshrl.u32 %v672, 7
        %v674 = vsub.s32 7, %v673
        %v675 = vrot.slane %v642, %v674
        %v684 = vsub.f32 %v468, %v647
        %v685 = vsub.f32 %v469, %v647
        %v686 = vsub.f32 %v470, %v651
        %v687 = vsub.f32 %v471, %v651
        %v688 = vsub.f32 %v472, %v655
        %v689 = vsub.f32 %v473, %v655
        %v690 = vsub.f32 %v474, %v659
        %v691 = vsub.f32 %v475, %v659
        %v692 = vsub.f32 %v476, %v663
        %v693 = vsub.f32 %v477, %v663
        %v694 = vsub.f32 %v478, %v667
        %v695 = vsub.f32 %v479, %v667
        %v696 = vsub.f32 %v480, %v671
        %v697 = vsub.f32 %v481, %v671
        %v698 = vsub.f32 %v482, %v675
        %v699 = vsub.f32 %v483, %v675
        %v700 = vmul.f32 %v684, 1.442695
        %v701 = vpow.pop %v700
        %v702 = vmul.f32 %v685, 1.442695
        %v703 = vpow.pop %v702
        %v704 = vmul.f32 %v686, 1.442695
        %v705 = vpow.pop %v704
        %v706 = vmul.f32 %v687, 1.442695
        %v707 = vpow.pop %v706
        %v708 = vmul.f32 %v688, 1.442695
        %v709 = vpow.pop %v708
        %v710 = vmul.f32 %v689, 1.442695
        %v711 = vpow.pop %v710
        %v712 = vmul.f32 %v690, 1.442695
        %v713 = vpow.pop %v712
        %v714 = vmul.f32 %v691, 1.442695
        %v715 = vpow.pop %v714
        %v716 = vmul.f32 %v692, 1.442695
        %v717 = vpow.pop %v716
        %v718 = vmul.f32 %v693, 1.442695
        %v719 = vpow.pop %v718
        %v720 = vmul.f32 %v694, 1.442695
        %v721 = vpow.pop %v720
        %v722 = vmul.f32 %v695, 1.442695
        %v723 = vpow.pop %v722
        %v724 = vmul.f32 %v696, 1.442695
        %v725 = vpow.pop %v724
        %v726 = vmul.f32 %v697, 1.442695
        %v727 = vpow.pop %v726
        %v728 = vmul.f32 %v698, 1.442695
        %v729 = vpow.pop %v728
        %v730 = vmul.f32 %v699, 1.442695
        %v731 = vpow.pop %v730
        %748 = vset.pattern.permute.xlu0 0
        %749 = vperm.xlu0 %748, %v701
        %v750 = vpop.permute.xlu0 %749
        %751 = vset.pattern.permute.xlu0 0
        %752 = vperm.xlu0 %751, %v703
        %v753 = vpop.permute.xlu0 %752
        %754 = vset.pattern.permute.xlu0 0
        %755 = vperm.xlu0 %754, %v705
        %v756 = vpop.permute.xlu0 %755
        %757 = vset.pattern.permute.xlu0 0
        %758 = vperm.xlu0 %757, %v707
        %v759 = vpop.permute.xlu0 %758
        %760 = vset.pattern.permute.xlu0 0
        %761 = vperm.xlu0 %760, %v709
        %v762 = vpop.permute.xlu0 %761
        %763 = vset.pattern.permute.xlu0 0
        %764 = vperm.xlu0 %763, %v711
        %v765 = vpop.permute.xlu0 %764
        %766 = vset.pattern.permute.xlu0 0
        %767 = vperm.xlu0 %766, %v713
        %v768 = vpop.permute.xlu0 %767
        %769 = vset.pattern.permute.xlu0 0
        %770 = vperm.xlu0 %769, %v715
        %v771 = vpop.permute.xlu0 %770
        %772 = vset.pattern.permute.xlu0 0
        %773 = vperm.xlu0 %772, %v717
        %v774 = vpop.permute.xlu0 %773
        %775 = vset.pattern.permute.xlu0 0
        %776 = vperm.xlu0 %775, %v719
        %v777 = vpop.permute.xlu0 %776
        %778 = vset.pattern.permute.xlu0 0
        %779 = vperm.xlu0 %778, %v721
        %v780 = vpop.permute.xlu0 %779
        %781 = vset.pattern.permute.xlu0 0
        %782 = vperm.xlu0 %781, %v723
        %v783 = vpop.permute.xlu0 %782
        %784 = vset.pattern.permute.xlu0 0
        %785 = vperm.xlu0 %784, %v725
        %v786 = vpop.permute.xlu0 %785
        %787 = vset.pattern.permute.xlu0 0
        %788 = vperm.xlu0 %787, %v727
        %v789 = vpop.permute.xlu0 %788
        %790 = vset.pattern.permute.xlu0 0
        %791 = vperm.xlu0 %790, %v729
        %v792 = vpop.permute.xlu0 %791
        %793 = vset.pattern.permute.xlu0 0
        %794 = vperm.xlu0 %793, %v731
        %v795 = vpop.permute.xlu0 %794
        %v796 = vlaneseq
        %v797 = vshrl.u32 %v796, 7
        %v798 = vsub.s32 %v549, %v797
        %v799 = vrot.slane %v750, %v798
        %v800 = vlaneseq
        %v801 = vshrl.u32 %v800, 7
        %v802 = vsub.s32 %v554, %v801
        %v803 = vrot.slane %v753, %v802
        %v804 = vsel %vm559, %v803, %v799
        %v805 = vlaneseq
        %v806 = vshrl.u32 %v805, 7
        %v807 = vsub.s32 %v549, %v806
        %v808 = vrot.slane %v756, %v807
        %v809 = vlaneseq
        %v810 = vshrl.u32 %v809, 7
        %v811 = vsub.s32 %v554, %v810
        %v812 = vrot.slane %v759, %v811
        %v813 = vsel %vm559, %v812, %v808
        %v814 = vlaneseq
        %v815 = vshrl.u32 %v814, 7
        %v816 = vsub.s32 %v549, %v815
        %v817 = vrot.slane %v762, %v816
        %v818 = vlaneseq
        %v819 = vshrl.u32 %v818, 7
        %v820 = vsub.s32 %v554, %v819
        %v821 = vrot.slane %v765, %v820
        %v822 = vsel %vm559, %v821, %v817
        %v823 = vlaneseq
        %v824 = vshrl.u32 %v823, 7
        %v825 = vsub.s32 %v549, %v824
        %v826 = vrot.slane %v768, %v825
        %v827 = vlaneseq
        %v828 = vshrl.u32 %v827, 7
        %v829 = vsub.s32 %v554, %v828
        %v830 = vrot.slane %v771, %v829
        %v831 = vsel %vm559, %v830, %v826
        %v832 = vlaneseq
        %v833 = vshrl.u32 %v832, 7
        %v834 = vsub.s32 %v549, %v833
        %v835 = vrot.slane %v774, %v834
        %v836 = vlaneseq
        %v837 = vshrl.u32 %v836, 7
        %v838 = vsub.s32 %v554, %v837
        %v839 = vrot.slane %v777, %v838
        %v840 = vsel %vm559, %v839, %v835
        %v841 = vlaneseq
        %v842 = vshrl.u32 %v841, 7
        %v843 = vsub.s32 %v549, %v842
        %v844 = vrot.slane %v780, %v843
        %v845 = vlaneseq
        %v846 = vshrl.u32 %v845, 7
        %v847 = vsub.s32 %v554, %v846
        %v848 = vrot.slane %v783, %v847
        %v849 = vsel %vm559, %v848, %v844
        %v850 = vlaneseq
        %v851 = vshrl.u32 %v850, 7
        %v852 = vsub.s32 %v549, %v851
        %v853 = vrot.slane %v786, %v852
        %v854 = vlaneseq
        %v855 = vshrl.u32 %v854, 7
        %v856 = vsub.s32 %v554, %v855
        %v857 = vrot.slane %v789, %v856
        %v858 = vsel %vm559, %v857, %v853
        %v859 = vlaneseq
        %v860 = vshrl.u32 %v859, 7
        %v861 = vsub.s32 %v549, %v860
        %v862 = vrot.slane %v792, %v861
        %v863 = vlaneseq
        %v864 = vshrl.u32 %v863, 7
        %v865 = vsub.s32 %v554, %v864
        %v866 = vrot.slane %v795, %v865
        %v867 = vsel %vm559, %v866, %v862
        %v868 = vsel %vm624, %v813, %v804
        %v869 = vsel %vm626, %v822, %v868
        %v870 = vsel %vm628, %v831, %v869
        %v871 = vsel %vm630, %v840, %v870
        %v872 = vsel %vm632, %v849, %v871
        %v873 = vsel %vm634, %v858, %v872
        %v874 = vsel %vm636, %v867, %v873
        %v876 = vsel %vm639, %v874, 0.0
        %877 = vadd.xlane.f32.xlu0 %v876
        %v878 = vpop.xlane.xlu0 %877
        %v895 = vmul.f32 %v750, %v256
        %v896 = vmul.f32 %v753, %v257
        %v897 = vmul.f32 %v756, %v258
        %v898 = vmul.f32 %v759, %v259
        %v899 = vmul.f32 %v762, %v260
        %v900 = vmul.f32 %v765, %v261
        %v901 = vmul.f32 %v768, %v262
        %v902 = vmul.f32 %v771, %v263
        %v903 = vmul.f32 %v774, %v264
        %v904 = vmul.f32 %v777, %v265
        %v905 = vmul.f32 %v780, %v266
        %v906 = vmul.f32 %v783, %v267
        %v907 = vmul.f32 %v786, %v268
        %v908 = vmul.f32 %v789, %v269
        %v909 = vmul.f32 %v792, %v270
        %v910 = vmul.f32 %v795, %v271
        %v911 = vsel %vm296, %v895, 0.0
        %v912 = vsel %vm296, %v896, 0.0
        %v913 = vadd.f32 %v911, %v912
        %v914 = vrot.slane %v913, 4
        %v915 = vadd.f32 %v913, %v914
        %v916 = vrot.slane %v915, 2
        %v917 = vadd.f32 %v915, %v916
        %v918 = vrot.slane %v917, 1
        %v919 = vadd.f32 %v917, %v918
        %v920 = vsel %vm296, %v897, 0.0
        %v921 = vsel %vm296, %v898, 0.0
        %v922 = vadd.f32 %v920, %v921
        %v923 = vrot.slane %v922, 4
        %v924 = vadd.f32 %v922, %v923
        %v925 = vrot.slane %v924, 2
        %v926 = vadd.f32 %v924, %v925
        %v927 = vrot.slane %v926, 1
        %v928 = vadd.f32 %v926, %v927
        %v929 = vsel %vm296, %v899, 0.0
        %v930 = vsel %vm296, %v900, 0.0
        %v931 = vadd.f32 %v929, %v930
        %v932 = vrot.slane %v931, 4
        %v933 = vadd.f32 %v931, %v932
        %v934 = vrot.slane %v933, 2
        %v935 = vadd.f32 %v933, %v934
        %v936 = vrot.slane %v935, 1
        %v937 = vadd.f32 %v935, %v936
        %v938 = vsel %vm296, %v901, 0.0
        %v939 = vsel %vm296, %v902, 0.0
        %v940 = vadd.f32 %v938, %v939
        %v941 = vrot.slane %v940, 4
        %v942 = vadd.f32 %v940, %v941
        %v943 = vrot.slane %v942, 2
        %v944 = vadd.f32 %v942, %v943
        %v945 = vrot.slane %v944, 1
        %v946 = vadd.f32 %v944, %v945
        %v947 = vsel %vm296, %v903, 0.0
        %v948 = vsel %vm296, %v904, 0.0
        %v949 = vadd.f32 %v947, %v948
        %v950 = vrot.slane %v949, 4
        %v951 = vadd.f32 %v949, %v950
        %v952 = vrot.slane %v951, 2
        %v953 = vadd.f32 %v951, %v952
        %v954 = vrot.slane %v953, 1
        %v955 = vadd.f32 %v953, %v954
        %v956 = vsel %vm296, %v905, 0.0
        %v957 = vsel %vm296, %v906, 0.0
        %v958 = vadd.f32 %v956, %v957
        %v959 = vrot.slane %v958, 4
        %v960 = vadd.f32 %v958, %v959
        %v961 = vrot.slane %v960, 2
        %v962 = vadd.f32 %v960, %v961
        %v963 = vrot.slane %v962, 1
        %v964 = vadd.f32 %v962, %v963
        %v965 = vsel %vm296, %v907, 0.0
        %v966 = vsel %vm296, %v908, 0.0
        %v967 = vadd.f32 %v965, %v966
        %v968 = vrot.slane %v967, 4
        %v969 = vadd.f32 %v967, %v968
        %v970 = vrot.slane %v969, 2
        %v971 = vadd.f32 %v969, %v970
        %v972 = vrot.slane %v971, 1
        %v973 = vadd.f32 %v971, %v972
        %v974 = vsel %vm296, %v909, 0.0
        %v975 = vsel %vm296, %v910, 0.0
        %v976 = vadd.f32 %v974, %v975
        %v977 = vrot.slane %v976, 4
        %v978 = vadd.f32 %v976, %v977
        %v979 = vrot.slane %v978, 2
        %v980 = vadd.f32 %v978, %v979
        %v981 = vrot.slane %v980, 1
        %v982 = vadd.f32 %v980, %v981
        %v983 = vrcp.pop %v878
        %v984 = vmul.f32 %v878, %v983
        %v985 = vsub.f32 2.0, %v984
        %v986 = vmul.f32 %v983, %v985
        %v988 = vrot.slane %v986, 1
        %v989 = vrot.slane %v986, 2
        %v990 = vrot.slane %v986, 3
        %v991 = vrot.slane %v986, 4
        %v992 = vrot.slane %v986, 5
        %v993 = vrot.slane %v986, 6
        %v994 = vrot.slane %v986, 7
        %v1003 = vmul.f32 %v919, %v986
        %v1004 = vmul.f32 %v928, %v988
        %v1005 = vmul.f32 %v937, %v989
        %v1006 = vmul.f32 %v946, %v990
        %v1007 = vmul.f32 %v955, %v991
        %v1008 = vmul.f32 %v964, %v992
        %v1009 = vmul.f32 %v973, %v993
        %v1010 = vmul.f32 %v982, %v994
        %v1019 = vrot.slane %v1004, 7
        %v1020 = vsel %vm624, %v1019, %v1003
        %v1021 = vrot.slane %v1005, 6
        %v1022 = vsel %vm626, %v1021, %v1020
        %v1023 = vrot.slane %v1006, 5
        %v1024 = vsel %vm628, %v1023, %v1022
        %v1025 = vrot.slane %v1007, 4
        %v1026 = vsel %vm630, %v1025, %v1024
        %v1027 = vrot.slane %v1008, 3
        %v1028 = vsel %vm632, %v1027, %v1026
        %v1029 = vrot.slane %v1009, 2
        %v1030 = vsel %vm634, %v1029, %v1028
        %v1031 = vrot.slane %v1010, 1
        %v1032 = vsel %vm636, %v1031, %v1030
        %1034 = vst.msk [vmem:[%s254] sm:$0xff] %vm296, %v1032
        %s1035 = sand.u32 %s127, 1
        %s1036 = scalar_lea.sflag [#allocation5], %s1035
        %s1037 = sand.u32 %s127, 1
        %s1038 = smul.addr %s1037, 8
        %s1039 = scalar_lea.vmem [#allocation8], %s1038
        // Predicated region
        $region45: #{tpu_custom_call.1} parent=35 // pred_check
          %p1040 = pneg %p137
        $region46: #{tpu_custom_call.1} parent=35 // pred_check_branch
          %1042 = sbr.rel (%p1040) target = $region48
        $region47: #{tpu_custom_call.1} parent=35 // pred_region
          %s1044 = ssub.s32 128, 128
          %1045 = vsyncadd %s1036, %s1044
          %s1046 = smul.addr %s25, 128
          %s1047 = scalar_lea.hbm %s4, %s1046
          %s1049 = sshll.u32 %s1039, 4
          %s1050 = int_to_ptr.vmem [resolvable:$true] %s1049
          %1052 = dma.vmem_to_hbm [thread:$0]  %s1050, 128, %s1047, %s1036
        $region48: #{tpu_custom_call.1} parent=35 // pred_fallthru
          _
      $region36: #{tpu_custom_call.1} parent=5 // pred_fallthru
        _
      %p1053 = scmp.le.s32.totalorder 2, %s20
      // Predicated region
      $region49: #{tpu_custom_call.1} parent=5 // pred_check
        %p1054 = pneg %p1053
      $region50: #{tpu_custom_call.1} parent=5 // pred_check_branch
        %1056 = sbr.rel (%p1054) target = $region52
      $region51: #{tpu_custom_call.1} parent=5 // pred_region
        %s1057 = ssub.s32 %s20, 2
        // Predicated region
        $region53: #{tpu_custom_call.1} parent=51 // pred_check
          %p1058 = pneg %p143
        $region54: #{tpu_custom_call.1} parent=51 // pred_check_branch
          %1060 = sbr.rel (%p1058) target = $region56
        $region55: #{tpu_custom_call.1} parent=51 // pred_region
          %s1061 = sand.u32 %s128, 1
          %s1062 = scalar_lea.sflag [#allocation5], %s1061
          %s1063 = sand.u32 %s128, 1
          %s1064 = smul.addr %s1063, 8
          %s1065 = scalar_lea.vmem [#allocation8], %s1064
          %1066 = dma.done %s1062, 128
        $region56: #{tpu_custom_call.1} parent=51 // pred_fallthru
          _
      $region52: #{tpu_custom_call.1} parent=5 // pred_fallthru
        _
    $region6: #{tpu_custom_call.1} parent=1 // loop_footer
      %s24 = sadd.s32 1, %s20
    $region7: #{tpu_custom_call.1} parent=1 // loop_footer_branch
      %19 = sbr.rel target = $region3
    $region8: #{tpu_custom_call.1} parent=1 // loop_exit
      _
    %1067 = vsyncpa [#allocation4], 1
    %s1068 = scalar_lea.sflag [#allocation4], 1
    %1069 = vsyncpa %s1068, 1
    %1070 = vsyncpa [#allocation7], 1
    %s1071 = scalar_lea.sflag [#allocation7], 1
    %1072 = vsyncpa %s1071, 1
    %1073 = vsyncpa [#allocation5], 1
    %s1074 = scalar_lea.sflag [#allocation5], 1
    %1075 = vsyncpa %s1074, 1

</llo_original>
